<compile_context>
chip_gen: v5e
topology: v5e:2x2
jax: 0.10.0
libtpu: 0.0.40
codegen_flags: <defaults>
</compile_context>

<pallas_src>
import functools
import math

import jax
import jax.numpy as jnp
from jax.experimental import pallas as pl
from jax.experimental.pallas import tpu as pltpu

_SUBLANE = 8


def _round_up(x, m):
    return ((x + m - 1) // m) * m


def _mlp_policy_kernel(n_layers, compute_dtype, obs_ref, tf_ref, *args):
    """One batch tile of the mean-net MLP, entirely in VMEM.

    args layout (all VMEM refs):
      args[0]                   w0_obs  (ob_dim, size)   first-layer weight, obs columns (bf16)
      args[1]                   w0_tf   (1, size)        first-layer weight, target_feature row (f32)
      args[2 : n_layers + 1]    W_1 .. W_{n_layers-1}    hidden weights (size, size) (bf16)
      args[n_layers + 1]        W_out   (size, ac_dim)   output weight (bf16)
      args[n_layers + 2 : -1]   b_0 .. b_out             biases (1, feat), f32
      args[-1]                  mean_ref (tile_b, ac_dim) output tile (f32)
    """
    n_w = n_layers + 2
    w_refs = args[:n_w]
    b_refs = args[n_w:n_w + n_layers + 1]
    mean_ref = args[-1]

    cd = compute_dtype
    obs = obs_ref[...].astype(cd)

    # First hidden layer with the concat fused:
    #   concat([obs, tf], 1) @ W0 == obs @ W0[:ob_dim] + tf * W0[ob_dim, :]
    # The tf term is a rank-1 broadcast multiply on the VALU (f32), not a K=1
    # MXU matmul.
    h = (jnp.dot(obs, w_refs[0][...], preferred_element_type=jnp.float32)
         + tf_ref[...] * w_refs[1][...]
         + b_refs[0][...])
    x = jnp.tanh(h)

    # Remaining hidden layers: Linear + tanh (ptu.build_mlp default activation).
    for i in range(1, n_layers):
        x = jnp.tanh(
            jnp.dot(x.astype(cd), w_refs[i + 1][...],
                    preferred_element_type=jnp.float32)
            + b_refs[i][...])

    # Output layer: Linear, identity output activation. Narrow (ac_dim) store is
    # a masked vst — trivially cheap compared with the HBM bytes it saves.
    mean = (jnp.dot(x.astype(cd), w_refs[n_layers + 1][...],
                    preferred_element_type=jnp.float32)
            + b_refs[n_layers][...])
    mean_ref[...] = mean.astype(mean_ref.dtype)


def prepare_params(params, ob_dim, *, compute_dtype=jnp.bfloat16):
    """One-time parameter preparation (hoisted out of the per-call forward).

    Splits W0 into obs / target_feature parts, casts matmul weights to the MXU
    dtype and biases to f32. Call once per parameter set and reuse.
    """
    weights = params["weights"]
    biases = params["biases"]
    n_layers = len(weights) - 1
    assert n_layers >= 1, "kernel assumes at least one hidden layer"

    w0 = weights[0]
    w0_obs = w0[:ob_dim].astype(compute_dtype)          # (ob_dim, size), MXU path
    w0_tf = w0[ob_dim:].astype(jnp.float32)             # (1, size), stays f32 (VPU path)
    hidden_ws = [w.astype(compute_dtype) for w in weights[1:n_layers]]
    w_out = weights[-1].astype(compute_dtype)            # (size, ac_dim), no lane padding
    kernel_ws = [w0_obs, w0_tf] + hidden_ws + [w_out]
    kernel_bs = [b.astype(jnp.float32) for b in biases]  # (1, feat) each

    return {
        "kernel_ws": kernel_ws,
        "kernel_bs": kernel_bs,
        "logstd": params["logstd"],
        "n_layers": n_layers,
        "ob_dim": ob_dim,
        "compute_dtype": compute_dtype,
    }


def mlp_policy_forward(obs, target_feature, prepared, *, tile_b=2048):
    """Pallas-backed forward pass of MLPPolicy (continuous, no conv head).

    obs:            (B, ob_dim) float32
    target_feature: (B, 1)      float32
    prepared:       output of prepare_params()
    Returns:
      batch_mean (B, ac_dim) float32
      scale_tril (ac_dim, ac_dim) float32 -- batch-constant Cholesky factor;
        consumers broadcast it over the batch (torch's .repeat(B,1,1)) lazily.
    """
    kernel_ws = prepared["kernel_ws"]
    kernel_bs = prepared["kernel_bs"]
    n_layers = prepared["n_layers"]
    cd = prepared["compute_dtype"]
    B, ob_dim = obs.shape
    assert ob_dim == prepared["ob_dim"]
    ac_dim = kernel_ws[-1].shape[1]

    # Batch tiling: multiple of 8 sublanes; no wrapper padding — the last grid
    # block may be partial (OOB rows read undefined data, their writes are
    # discarded; safe because there is no cross-row reduction).
    tile_b = max(_SUBLANE, (tile_b // _SUBLANE) * _SUBLANE)
    if B > _SUBLANE:
        # v7x: keep >= 2 grid steps so the "parallel" batch axis can feed both TCs.
        tile_b = min(tile_b, _round_up(pl.cdiv(B, 2), _SUBLANE))
    tile_b = min(tile_b, _round_up(B, _SUBLANE))
    grid = (pl.cdiv(B, tile_b),)

    # BlockSpecs: batch-tiled obs / tf / mean; constant index maps keep the tiny
    # parameters VMEM-resident (fetched once, reused every grid step).
    obs_spec = pl.BlockSpec((tile_b, ob_dim), lambda i: (i, 0))
    tf_spec = pl.BlockSpec((tile_b, 1), lambda i: (i, 0))
    const_specs = [pl.BlockSpec(a.shape, lambda i: (0, 0))
                   for a in kernel_ws + kernel_bs]
    out_spec = pl.BlockSpec((tile_b, ac_dim), lambda i: (i, 0))

    batch_mean = pl.pallas_call(
        functools.partial(_mlp_policy_kernel, n_layers, cd),
        out_shape=jax.ShapeDtypeStruct((B, ac_dim), jnp.float32),
        grid=grid,
        in_specs=[obs_spec, tf_spec] + const_specs,
        out_specs=out_spec,
        compiler_params=pltpu.CompilerParams(
            dimension_semantics=("parallel",),          # batch axis over megacore
            vmem_limit_bytes=32 * 1024 * 1024),
    )(obs, target_feature, *kernel_ws, *kernel_bs)

    # scale_tril = diag(exp(logstd)) is batch-constant O(ac_dim^2) glue: plain JAX,
    # and we never materialize the eager (B, ac_dim, ac_dim) repeat.
    scale_tril = jnp.diag(jnp.exp(prepared["logstd"]))
    # TODO(synk): torch.distributions.MultivariateNormal has no Pallas equivalent;
    # we return its parameters (batch_mean, scale_tril) instead.
    return batch_mean, scale_tril


def init_params(key, ob_dim, ac_dim, n_layers, size):
    """Deterministic init mirroring nn.Linear defaults (uniform +/- 1/sqrt(fan_in))."""
    dims = [ob_dim + 1] + [size] * n_layers + [ac_dim]
    weights, biases = [], []
    for i in range(len(dims) - 1):
        fan_in, fan_out = dims[i], dims[i + 1]
        key, kw, kb = jax.random.split(key, 3)
        bound = 1.0 / math.sqrt(fan_in)
        weights.append(
            jax.random.uniform(kw, (fan_in, fan_out), jnp.float32, -bound, bound))
        biases.append(
            jax.random.uniform(kb, (1, fan_out), jnp.float32, -bound, bound))
    logstd = jnp.zeros((ac_dim,), jnp.float32)  # nn.Parameter(torch.zeros(ac_dim))
    return {"weights": weights, "biases": biases, "logstd": logstd}


if __name__ == "__main__":
    # Small shapes consistent with MLPPolicy(ac_dim, ob_dim, n_layers, size).
    B, ob_dim, ac_dim, n_layers, size = 2, 10, 4, 2, 32

    key = jax.random.PRNGKey(0)
    key, k_obs, k_tf = jax.random.split(key, 3)
    obs = jax.random.normal(k_obs, (B, ob_dim), jnp.float32)
    target_feature = jax.random.normal(k_tf, (B, 1), jnp.float32)
    params = init_params(key, ob_dim, ac_dim, n_layers, size)
    prepared = prepare_params(params, ob_dim)

    batch_mean, scale_tril = mlp_policy_forward(obs, target_feature, prepared)
    jax.block_until_ready((batch_mean, scale_tril))
    assert batch_mean.shape == (B, ac_dim)

    # Reference A: identical math (bf16 MXU weights, f32 accumulate, f32 tf term).
    def ref_matched(o, t):
        cd = jnp.bfloat16
        x = jnp.tanh(
            jnp.dot(o.astype(cd), params["weights"][0][:ob_dim].astype(cd),
                    preferred_element_type=jnp.float32)
            + t * params["weights"][0][ob_dim:]
            + params["biases"][0])
        for i in range(1, n_layers):
            x = jnp.tanh(jnp.dot(x.astype(cd), params["weights"][i].astype(cd),
                                 preferred_element_type=jnp.float32)
                         + params["biases"][i])
        return (jnp.dot(x.astype(cd), params["weights"][-1].astype(cd),
                        preferred_element_type=jnp.float32)
                + params["biases"][-1])

    # Reference B: full-f32 PyTorch-faithful path (loose tolerance: bf16 rounding).
    def ref_f32(o, t):
        x = jnp.concatenate([o, t], axis=1)
        for i in range(n_layers):
            x = jnp.tanh(x @ params["weights"][i] + params["biases"][i])
        return x @ params["weights"][-1] + params["biases"][-1]

    assert jnp.allclose(batch_mean, ref_matched(obs, target_feature), atol=1e-3), \
        "mean mismatch (matched precision)"
    assert jnp.allclose(batch_mean, ref_f32(obs, target_feature), atol=3e-2), \
        "mean mismatch (f32 reference)"

    scale_ref = jnp.diag(jnp.exp(params["logstd"]))
    assert jnp.allclose(scale_tril, scale_ref, atol=1e-6), "scale_tril mismatch"
    # torch tiles scale_tril over the batch; lazy broadcasting reproduces that view.
    batch_scale_tril = jnp.broadcast_to(scale_tril[None], (B, ac_dim, ac_dim))
    assert batch_scale_tril.shape == (B, ac_dim, ac_dim)

    # Exercise the multi-step grid with a partial (non-divisible) last block.
    B2 = 300
    key, k_obs2, k_tf2 = jax.random.split(key, 3)
    obs2 = jax.random.normal(k_obs2, (B2, ob_dim), jnp.float32)
    tf2 = jax.random.normal(k_tf2, (B2, 1), jnp.float32)
    mean2, _ = mlp_policy_forward(obs2, tf2, prepared, tile_b=64)
    jax.block_until_ready(mean2)
    assert mean2.shape == (B2, ac_dim)
    assert jnp.allclose(mean2, ref_f32(obs2, tf2), atol=3e-2), \
        "mean mismatch (multi-block grid)"

    print("KERNEL_OK")
</pallas_src>

<mosaic_0001>
module attributes {stable_mosaic.version = 11 : i64} {
  func.func @_mlp_policy_kernel(%arg0: i32, %arg1: memref<8x10xf32, #tpu.memory_space<vmem>>, %arg2: memref<8x1xf32, #tpu.memory_space<vmem>>, %arg3: memref<10x32xbf16, #tpu.memory_space<vmem>>, %arg4: memref<1x32xf32, #tpu.memory_space<vmem>>, %arg5: memref<32x32xbf16, #tpu.memory_space<vmem>>, %arg6: memref<32x4xbf16, #tpu.memory_space<vmem>>, %arg7: memref<1x32xf32, #tpu.memory_space<vmem>>, %arg8: memref<1x32xf32, #tpu.memory_space<vmem>>, %arg9: memref<1x4xf32, #tpu.memory_space<vmem>>, %arg10: memref<8x4xf32, #tpu.memory_space<vmem>>) attributes {dimension_semantics = [#tpu.dimension_semantics<parallel>], iteration_bounds = array<i64: 1>, scalar_prefetch = 0 : i64, scratch_operands = 0 : i64, tpu.core_type = #tpu.core_type<tc>, window_params = [{transform_indices = @transform_0, window_bounds = array<i64: 8, 10>}, {transform_indices = @transform_1, window_bounds = array<i64: 8, 1>}, {pipeline_mode = #tpu.pipeline_mode<synchronous>, transform_indices = @transform_2, window_bounds = array<i64: 10, 32>}, {pipeline_mode = #tpu.pipeline_mode<synchronous>, transform_indices = @transform_3, window_bounds = array<i64: 1, 32>}, {pipeline_mode = #tpu.pipeline_mode<synchronous>, transform_indices = @transform_4, window_bounds = array<i64: 32, 32>}, {pipeline_mode = #tpu.pipeline_mode<synchronous>, transform_indices = @transform_5, window_bounds = array<i64: 32, 4>}, {pipeline_mode = #tpu.pipeline_mode<synchronous>, transform_indices = @transform_6, window_bounds = array<i64: 1, 32>}, {pipeline_mode = #tpu.pipeline_mode<synchronous>, transform_indices = @transform_7, window_bounds = array<i64: 1, 32>}, {pipeline_mode = #tpu.pipeline_mode<synchronous>, transform_indices = @transform_8, window_bounds = array<i64: 1, 4>}, {transform_indices = @transform_9, window_bounds = array<i64: 8, 4>}]} {
    %c0 = arith.constant 0 : index
    %c0_0 = arith.constant 0 : index
    %0 = vector.load %arg1[%c0, %c0_0] : memref<8x10xf32, #tpu.memory_space<vmem>>, vector<8x10xf32>
    %1 = arith.truncf %0 : vector<8x10xf32> to vector<8x10xbf16>
    %c0_1 = arith.constant 0 : index
    %c0_2 = arith.constant 0 : index
    %2 = vector.load %arg3[%c0_1, %c0_2] : memref<10x32xbf16, #tpu.memory_space<vmem>>, vector<10x32xbf16>
    %cst = arith.constant dense<0.000000e+00> : vector<8x32xf32>
    %3 = tpu.matmul %1, %2, %cst {dimension_numbers = #tpu.dot_dimension_numbers<[1], [0], [0], [1], [0, 0, 1, 1], [], []>} : vector<8x10xbf16>, vector<10x32xbf16>, vector<8x32xf32> -> vector<8x32xf32>
    %c0_3 = arith.constant 0 : index
    %c0_4 = arith.constant 0 : index
    %4 = vector.load %arg2[%c0_3, %c0_4] : memref<8x1xf32, #tpu.memory_space<vmem>>, vector<8x1xf32>
    %c0_5 = arith.constant 0 : index
    %c0_6 = arith.constant 0 : index
    %5 = vector.load %arg4[%c0_5, %c0_6] : memref<1x32xf32, #tpu.memory_space<vmem>>, vector<1x32xf32>
    %6 = vector.broadcast %4 : vector<8x1xf32> to vector<8x32xf32>
    %7 = vector.broadcast %5 : vector<1x32xf32> to vector<8x32xf32>
    %8 = arith.mulf %6, %7 : vector<8x32xf32>
    %9 = arith.addf %3, %8 : vector<8x32xf32>
    %c0_7 = arith.constant 0 : index
    %c0_8 = arith.constant 0 : index
    %10 = vector.load %arg7[%c0_7, %c0_8] : memref<1x32xf32, #tpu.memory_space<vmem>>, vector<1x32xf32>
    %11 = vector.broadcast %10 : vector<1x32xf32> to vector<8x32xf32>
    %12 = arith.addf %9, %11 : vector<8x32xf32>
    %13 = math.tanh %12 : vector<8x32xf32>
    %14 = arith.truncf %13 : vector<8x32xf32> to vector<8x32xbf16>
    %c0_9 = arith.constant 0 : index
    %c0_10 = arith.constant 0 : index
    %15 = vector.load %arg5[%c0_9, %c0_10] : memref<32x32xbf16, #tpu.memory_space<vmem>>, vector<32x32xbf16>
    %cst_11 = arith.constant dense<0.000000e+00> : vector<8x32xf32>
    %16 = tpu.matmul %14, %15, %cst_11 {dimension_numbers = #tpu.dot_dimension_numbers<[1], [0], [0], [1], [0, 0, 1, 1], [], []>} : vector<8x32xbf16>, vector<32x32xbf16>, vector<8x32xf32> -> vector<8x32xf32>
    %c0_12 = arith.constant 0 : index
    %c0_13 = arith.constant 0 : index
    %17 = vector.load %arg8[%c0_12, %c0_13] : memref<1x32xf32, #tpu.memory_space<vmem>>, vector<1x32xf32>
    %18 = vector.broadcast %17 : vector<1x32xf32> to vector<8x32xf32>
    %19 = arith.addf %16, %18 : vector<8x32xf32>
    %20 = math.tanh %19 : vector<8x32xf32>
    %21 = arith.truncf %20 : vector<8x32xf32> to vector<8x32xbf16>
    %c0_14 = arith.constant 0 : index
    %c0_15 = arith.constant 0 : index
    %22 = vector.load %arg6[%c0_14, %c0_15] : memref<32x4xbf16, #tpu.memory_space<vmem>>, vector<32x4xbf16>
    %cst_16 = arith.constant dense<0.000000e+00> : vector<8x4xf32>
    %23 = tpu.matmul %21, %22, %cst_16 {dimension_numbers = #tpu.dot_dimension_numbers<[1], [0], [0], [1], [0, 0, 1, 1], [], []>} : vector<8x32xbf16>, vector<32x4xbf16>, vector<8x4xf32> -> vector<8x4xf32>
    %c0_17 = arith.constant 0 : index
    %c0_18 = arith.constant 0 : index
    %24 = vector.load %arg9[%c0_17, %c0_18] : memref<1x4xf32, #tpu.memory_space<vmem>>, vector<1x4xf32>
    %25 = vector.broadcast %24 : vector<1x4xf32> to vector<8x4xf32>
    %26 = arith.addf %23, %25 : vector<8x4xf32>
    %c0_19 = arith.constant 0 : index
    %c0_20 = arith.constant 0 : index
    %27 = vector.load %arg10[%c0_19, %c0_20] : memref<8x4xf32, #tpu.memory_space<vmem>>, vector<8x4xf32>
    tpu.vector_store %arg10[%c0_19, %c0_20], %26 {strides = array<i32>} : memref<8x4xf32, #tpu.memory_space<vmem>>, vector<8x4xf32>,
    return
  }
  func.func @transform_0(%arg0: i32) -> (i32, i32) {
    %c0_i32 = arith.constant 0 : i32
    %c0_i32_0 = arith.constant 0 : i32
    return %arg0, %c0_i32 : i32, i32
  }
  func.func @transform_1(%arg0: i32) -> (i32, i32) {
    %c0_i32 = arith.constant 0 : i32
    %c0_i32_0 = arith.constant 0 : i32
    return %arg0, %c0_i32 : i32, i32
  }
  func.func @transform_2(%arg0: i32) -> (i32, i32) {
    %c0_i32 = arith.constant 0 : i32
    %c0_i32_0 = arith.constant 0 : i32
    %c0_i32_1 = arith.constant 0 : i32
    return %c0_i32, %c0_i32_0 : i32, i32
  }
  func.func @transform_3(%arg0: i32) -> (i32, i32) {
    %c0_i32 = arith.constant 0 : i32
    %c0_i32_0 = arith.constant 0 : i32
    %c0_i32_1 = arith.constant 0 : i32
    return %c0_i32, %c0_i32_0 : i32, i32
  }
  func.func @transform_4(%arg0: i32) -> (i32, i32) {
    %c0_i32 = arith.constant 0 : i32
    %c0_i32_0 = arith.constant 0 : i32
    %c0_i32_1 = arith.constant 0 : i32
    return %c0_i32, %c0_i32_0 : i32, i32
  }
  func.func @transform_5(%arg0: i32) -> (i32, i32) {
    %c0_i32 = arith.constant 0 : i32
    %c0_i32_0 = arith.constant 0 : i32
    %c0_i32_1 = arith.constant 0 : i32
    return %c0_i32, %c0_i32_0 : i32, i32
  }
  func.func @transform_6(%arg0: i32) -> (i32, i32) {
    %c0_i32 = arith.constant 0 : i32
    %c0_i32_0 = arith.constant 0 : i32
    %c0_i32_1 = arith.constant 0 : i32
    return %c0_i32, %c0_i32_0 : i32, i32
  }
  func.func @transform_7(%arg0: i32) -> (i32, i32) {
    %c0_i32 = arith.constant 0 : i32
    %c0_i32_0 = arith.constant 0 : i32
    %c0_i32_1 = arith.constant 0 : i32
    return %c0_i32, %c0_i32_0 : i32, i32
  }
  func.func @transform_8(%arg0: i32) -> (i32, i32) {
    %c0_i32 = arith.constant 0 : i32
    %c0_i32_0 = arith.constant 0 : i32
    %c0_i32_1 = arith.constant 0 : i32
    return %c0_i32, %c0_i32_0 : i32, i32
  }
  func.func @transform_9(%arg0: i32) -> (i32, i32) {
    %c0_i32 = arith.constant 0 : i32
    %c0_i32_0 = arith.constant 0 : i32
    return %arg0, %c0_i32 : i32, i32
  }
}

</mosaic_0001>

<llo_original>
// kernel: tpu_custom_call.1
$region0: #{tpu_custom_call.1}
  #allocation0 [shape = 'u32[]', space=smem, size = 0x4, offset = 0x4, fixed_abs, tag = 'smem constant byte address 0x4 - core index']
  #allocation1 [shape = 'u32[72,128]{1,0:T(1,128)}', space=vmem, size = 0x9000, scoped, tag = 'internal scratch']
  %s0 = inlined_call_operand.vmem [shape: f32[2,10], index: 0, kind: input, shape index: {}]
  %s1 = inlined_call_operand.vmem [shape: f32[2,1], index: 1, kind: input, shape index: {}]
  %s2 = inlined_call_operand.hbm [shape: bf16[10,32], index: 2, kind: input, shape index: {}]
  %s3 = inlined_call_operand.vmem [shape: f32[1,32], index: 3, kind: input, shape index: {}]
  %s4 = inlined_call_operand.vmem [shape: bf16[32,32], index: 4, kind: input, shape index: {}]
  %s5 = inlined_call_operand.vmem [shape: bf16[32,4], index: 5, kind: input, shape index: {}]
  %s6 = inlined_call_operand.vmem [shape: f32[1,32], index: 6, kind: input, shape index: {}]
  %s7 = inlined_call_operand.vmem [shape: f32[1,32], index: 7, kind: input, shape index: {}]
  %s8 = inlined_call_operand.vmem [shape: f32[1,4], index: 8, kind: input, shape index: {}]
  %s9 = inlined_call_operand.hbm [shape: f32[2,4], index: 9, kind: output, shape index: {}]
  %s10 = sld [smem:[#allocation0]]
  $region50: #{tpu_custom_call.1} parent=0
    _
  %s12 = ssub.s32 1, %s10
  %s13 = scalar_select 0, %s12, %s10
  $region1: #{tpu_custom_call.1} parent=0
    #allocation2 [shape = 'u8[4096]{0}', space=vmem, size = 0x1000, scoped, tag = 'input window, operand 2, single buffered']
    #allocation3 [shape = 's32[1]{0}', space=sflag, size = 0x4, scoped, tag = 'scoped memory for tpu_custom_call.1']
    #allocation4 [shape = 's32[1]{0}', space=sflag, size = 0x4, scoped, tag = 'scoped memory for tpu_custom_call.1']
    #allocation5 [shape = 'u8[4096]{0}', space=vmem, size = 0x1000, scoped, tag = 'output window, operand 0, single buffered']
    %14 = vsyncpa [#allocation3], 0
    %15 = vsyncpa [#allocation4], 0
    // Predicated region
    $region2: #{tpu_custom_call.1} parent=1 // pred_check
      _
    $region3: #{tpu_custom_call.1} parent=1 // pred_check_branch
      %17 = sbr.rel (0) target = $region5
    $region4: #{tpu_custom_call.1} parent=1 // pred_region
      _
    $region5: #{tpu_custom_call.1} parent=1 // pred_fallthru
      _
    // Predicated region
    $region6: #{tpu_custom_call.1} parent=1 // pred_check
      _
    $region7: #{tpu_custom_call.1} parent=1 // pred_check_branch
      %19 = sbr.rel (0) target = $region9
    $region8: #{tpu_custom_call.1} parent=1 // pred_region
      _
    $region9: #{tpu_custom_call.1} parent=1 // pred_fallthru
      _
    // Predicated region
    $region10: #{tpu_custom_call.1} parent=1 // pred_check
      _
    $region11: #{tpu_custom_call.1} parent=1 // pred_check_branch
      %21 = sbr.rel (0) target = $region13
    $region12: #{tpu_custom_call.1} parent=1 // pred_region
      %23 = vsyncadd [#allocation3], 0
      %s24 = sshll.u32 %s2, 4
      %s25 = int_to_ptr.hbm [resolvable:$true] %s24
      %s26 = sshll.u32 [#allocation2], 4
      %s27 = int_to_ptr.vmem [resolvable:$true] %s26
      %32 = dma.hbm_to_vmem [thread:$0]  %s25, 128, %s27, [#allocation3], 64, 64, 4
    $region13: #{tpu_custom_call.1} parent=1 // pred_fallthru
      _
    // Predicated region
    $region14: #{tpu_custom_call.1} parent=1 // pred_check
      _
    $region15: #{tpu_custom_call.1} parent=1 // pred_check_branch
      %34 = sbr.rel (0) target = $region17
    $region16: #{tpu_custom_call.1} parent=1 // pred_region
      _
    $region17: #{tpu_custom_call.1} parent=1 // pred_fallthru
      _
    // Predicated region
    $region18: #{tpu_custom_call.1} parent=1 // pred_check
      _
    $region19: #{tpu_custom_call.1} parent=1 // pred_check_branch
      %36 = sbr.rel (0) target = $region21
    $region20: #{tpu_custom_call.1} parent=1 // pred_region
      _
    $region21: #{tpu_custom_call.1} parent=1 // pred_fallthru
      _
    // Predicated region
    $region22: #{tpu_custom_call.1} parent=1 // pred_check
      _
    $region23: #{tpu_custom_call.1} parent=1 // pred_check_branch
      %38 = sbr.rel (0) target = $region25
    $region24: #{tpu_custom_call.1} parent=1 // pred_region
      _
    $region25: #{tpu_custom_call.1} parent=1 // pred_fallthru
      _
    // Predicated region
    $region26: #{tpu_custom_call.1} parent=1 // pred_check
      _
    $region27: #{tpu_custom_call.1} parent=1 // pred_check_branch
      %40 = sbr.rel (0) target = $region29
    $region28: #{tpu_custom_call.1} parent=1 // pred_region
      _
    $region29: #{tpu_custom_call.1} parent=1 // pred_fallthru
      _
    // Predicated region
    $region30: #{tpu_custom_call.1} parent=1 // pred_check
      _
    $region31: #{tpu_custom_call.1} parent=1 // pred_check_branch
      %42 = sbr.rel (0) target = $region33
    $region32: #{tpu_custom_call.1} parent=1 // pred_region
      _
    $region33: #{tpu_custom_call.1} parent=1 // pred_fallthru
      _
    // Predicated region
    $region34: #{tpu_custom_call.1} parent=1 // pred_check
      _
    $region35: #{tpu_custom_call.1} parent=1 // pred_check_branch
      %44 = sbr.rel (0) target = $region37
    $region36: #{tpu_custom_call.1} parent=1 // pred_region
      _
    $region37: #{tpu_custom_call.1} parent=1 // pred_fallthru
      _
    // Predicated region
    $region38: #{tpu_custom_call.1} parent=1 // pred_check
      _
    $region39: #{tpu_custom_call.1} parent=1 // pred_check_branch
      %46 = sbr.rel (0) target = $region41
    $region40: #{tpu_custom_call.1} parent=1 // pred_region
      %48 = dma.done [#allocation3], 128
    $region41: #{tpu_custom_call.1} parent=1 // pred_fallthru
      _
    %v50 = vld [vmem:[%s0] sm:$0xff]
    %v51 = vpack.c.bf16 %v50, %v50
    %v52 = vld [vmem:[#allocation2] sm:$0xf]
    %v53 = vld [vmem:[#allocation2 + $0x4] sm:$0x1]
    %v54 = vld [vmem:[%s1] sm:$0xff]
    %v55 = vld [vmem:[%s3] sm:$0x1]
    %57 = vset.pattern.permute.xlu0 0
    %58 = vperm.xlu0 %57, %v54
    %v59 = vpop.permute.xlu0 %58
    %v62 = vperm.slane %v55, 0
    %v64 = vmul.f32 %v59, %v62
    %v67 = vunpack.c.l.b16 %v52
    %v68 = vunpack.c.l.b16 %v53
    %v69 = vpack.c.b16 %v68, %v67
    %vm70 = vcmask 80896
    %v72 = vsel %vm70, %v51, 0
    %vm74 = vcmask 1044480
    %v76 = vsel %vm74, %v69, 0
    %78 = vmatpush.bf16.msra.mxu0 0
    %79 = vmatpush.bf16.msra.mxu0 0
    %80 = vmatpush.bf16.msra.mxu0 0
    %81 = vmatpush.bf16.msra.mxu0 0
    %82 = vmatpush.bf16.msra.mxu0 0
    %83 = vmatpush.bf16.msra.mxu0 0
    %84 = vmatpush.bf16.msra.mxu0 0
    %85 = vmatpush.bf16.msra.mxu0 %v76
    %86 = vmatmul.bf16.gmra.mxu0 %v72
    %v87 = vpop.f32.mrf.mxu0
    %v88 = vadd.f32 %v64, %v87
    %v89 = vpop.f32.mrf.mxu0
    %90 = vdwg.mxu0
    %v91 = vld [vmem:[%s6] sm:$0x1]
    %v93 = vperm.slane %v91, 0
    %v95 = vadd.f32 %v88, %v93
    %v96 = vtanh.pop %v95
    %v97 = vpack.c.bf16 %v96, %v96
    %v98 = vld [vmem:[%s4] sm:$0xf]
    %v99 = vld [vmem:[%s4 + $0x4] sm:$0xf]
    %v100 = vld [vmem:[%s4 + $0x8] sm:$0xf]
    %v101 = vld [vmem:[%s4 + $0xc] sm:$0xf]
    %v102 = vld [vmem:[%s7] sm:$0x1]
    %v104 = vperm.slane %v102, 0
    %v110 = vunpack.c.l.b16 %v98
    %v111 = vunpack.c.l.b16 %v99
    %v112 = vunpack.c.l.b16 %v100
    %v113 = vunpack.c.l.b16 %v101
    %v114 = vpack.c.b16 %v111, %v110
    %v115 = vpack.c.b16 %v113, %v112
    %vm118 = vcmask 261120
    %v120 = vsel %vm118, %v97, 0
    %122 = vmatpush.bf16.msra.mxu0 0
    %123 = vmatpush.bf16.msra.mxu0 0
    %124 = vmatpush.bf16.msra.mxu0 0
    %125 = vmatpush.bf16.msra.mxu0 0
    %126 = vmatpush.bf16.msra.mxu0 0
    %127 = vmatpush.bf16.msra.mxu0 0
    %128 = vmatpush.bf16.msra.mxu0 %v115
    %129 = vmatpush.bf16.msra.mxu0 %v114
    %130 = vmatmul.bf16.gmra.mxu0 %v120
    %v131 = vpop.f32.mrf.mxu0
    %v132 = vadd.f32 %v104, %v131
    %v133 = vpop.f32.mrf.mxu0
    %134 = vdwg.mxu0
    %v135 = vtanh.pop %v132
    %v136 = vpack.c.bf16 %v135, %v135
    %v137 = vld [vmem:[%s5] sm:$0xf]
    %v138 = vld [vmem:[%s5 + $0x4] sm:$0xf]
    %v139 = vld [vmem:[%s5 + $0x8] sm:$0xf]
    %v140 = vld [vmem:[%s5 + $0xc] sm:$0xf]
    %v141 = vld [vmem:[%s8] sm:$0x1]
    %v143 = vperm.slane %v141, 0
    %v149 = vunpack.c.l.b16 %v137
    %v150 = vunpack.c.l.b16 %v138
    %v151 = vunpack.c.l.b16 %v139
    %v152 = vunpack.c.l.b16 %v140
    %v153 = vpack.c.b16 %v150, %v149
    %v154 = vpack.c.b16 %v152, %v151
    %v158 = vsel %vm118, %v136, 0
    %160 = vmatpush.bf16.msra.mxu0 0
    %161 = vmatpush.bf16.msra.mxu0 0
    %162 = vmatpush.bf16.msra.mxu0 0
    %163 = vmatpush.bf16.msra.mxu0 0
    %164 = vmatpush.bf16.msra.mxu0 0
    %165 = vmatpush.bf16.msra.mxu0 0
    %166 = vmatpush.bf16.msra.mxu0 %v154
    %167 = vmatpush.bf16.msra.mxu0 %v153
    %168 = vmatmul.bf16.gmra.mxu0 %v158
    %v169 = vpop.f32.mrf.mxu0
    %v170 = vadd.f32 %v143, %v169
    %v171 = vpop.f32.mrf.mxu0
    %172 = vdwg.mxu0
    %vm173 = vcmask 31744
    %174 = vst.msk [vmem:[#allocation5] sm:$0xff] %vm173, %v170
    // Predicated region
    $region42: #{tpu_custom_call.1} parent=1 // pred_check
      _
    $region43: #{tpu_custom_call.1} parent=1 // pred_check_branch
      %176 = sbr.rel (0) target = $region45
    $region44: #{tpu_custom_call.1} parent=1 // pred_region
      %178 = vsyncadd [#allocation4], 96
      %s179 = sshll.u32 [#allocation5], 4
      %s180 = int_to_ptr.vmem [resolvable:$true] %s179
      %s181 = sshll.u32 %s9, 4
      %s182 = int_to_ptr.hbm [resolvable:$true] %s181
      %187 = dma.vmem_to_hbm [thread:$0]  %s180, 32, %s182, [#allocation4], 32, 32, 2
    $region45: #{tpu_custom_call.1} parent=1 // pred_fallthru
      _
    // Predicated region
    $region46: #{tpu_custom_call.1} parent=1 // pred_check
      _
    $region47: #{tpu_custom_call.1} parent=1 // pred_check_branch
      %189 = sbr.rel (0) target = $region49
    $region48: #{tpu_custom_call.1} parent=1 // pred_region
      %191 = dma.done [#allocation4], 128
    $region49: #{tpu_custom_call.1} parent=1 // pred_fallthru
      _
    %192 = vsyncpa [#allocation3], 1
    %193 = vsyncpa [#allocation4], 1

</llo_original>
